<compile_context>
chip_gen: v7x
topology: tpu7x:2x2x1
jax: 0.10.0
libtpu: 0.0.40
codegen_flags: <defaults>
</compile_context>

<pallas_src>
import jax
import jax.numpy as jnp
from jax.experimental import pallas as pl
from jax.experimental.pallas import tpu as pltpu

RESIZE = 224
CROP = 224
CLIP_MEAN = (0.48145466, 0.4578275, 0.40821073)
CLIP_STD = (0.26862954, 0.26130258, 0.27577711)

# Fold (x - mean) / std into a single multiply-add with baked-in constants.
_INV_STD = tuple(1.0 / s for s in CLIP_STD)
_NORM_BIAS = tuple(-m / s for m, s in zip(CLIP_MEAN, CLIP_STD))


def _bicubic_weight_matrix(in_size: int, out_size: int):
    """Dense (out_size, in_size) matrix matching torch bicubic, align_corners=False."""
    A = -0.75
    scale = in_size / out_size
    dst = jnp.arange(out_size, dtype=jnp.float32)
    src = scale * (dst + 0.5) - 0.5          # no clamp of negative src for cubic
    i0 = jnp.floor(src)
    t = src - i0

    def cubic1(x):  # |x| <= 1
        return ((A + 2.0) * x - (A + 3.0)) * x * x + 1.0

    def cubic2(x):  # 1 < |x| < 2
        return ((A * x - 5.0 * A) * x + 8.0 * A) * x - 4.0 * A

    coeffs = jnp.stack(
        [cubic2(t + 1.0), cubic1(t), cubic1(1.0 - t), cubic2(2.0 - t)], axis=1
    )  # (out, 4)
    base = i0.astype(jnp.int32) - 1
    idx = jnp.clip(
        base[:, None] + jnp.arange(4, dtype=jnp.int32)[None, :], 0, in_size - 1
    )  # (out, 4): border taps clamp -> weights accumulate on the edge pixel
    rows = jnp.broadcast_to(jnp.arange(out_size, dtype=jnp.int32)[:, None], idx.shape)
    w = jnp.zeros((out_size, in_size), jnp.float32)
    w = w.at[rows, idx].add(coeffs)
    return w


def _make_kernel(h_first: bool):
    """Kernel for one (image, channel) plane; h_first picks the contraction order."""

    def kernel(norm_ref, x_ref, wh_ref, wwt_ref, o_ref):
        # norm_ref: (3, 2) f32 in SMEM  [:, 0] = 1/std_c, [:, 1] = -mean_c/std_c
        # x_ref:    (H_in, W_in)        input plane (f32 or bf16)
        # wh_ref:   (224, H_in)         bf16 if h_first else f32
        # wwt_ref:  (W_in, 224)         f32 if h_first else bf16
        # o_ref:    (224, 224)          output plane
        c = pl.program_id(1)

        # Cast to bf16 in-kernel: VPU work hidden under the MXU, no extra HBM
        # pass (no-op if the caller already supplies bf16 pixels).
        x_mxu = x_ref[...].astype(jnp.bfloat16)

        if h_first:
            # Stage 1 (bf16, f32 acc): contract H.  Stage 2 stays f32.
            tmp = jnp.dot(wh_ref[...], x_mxu, preferred_element_type=jnp.float32)
            y = jnp.dot(tmp, wwt_ref[...], preferred_element_type=jnp.float32)
        else:
            # Stage 1 (bf16, f32 acc): contract W.  Stage 2 stays f32.
            tmp = jnp.dot(x_mxu, wwt_ref[...], preferred_element_type=jnp.float32)
            y = jnp.dot(wh_ref[...], tmp, preferred_element_type=jnp.float32)

        # Center crop is identity (CROP == RESIZE); fused CLIP normalize with
        # per-channel constants read from SMEM.
        scale = norm_ref[c, 0]
        bias = norm_ref[c, 1]
        o_ref[...] = (y * scale + bias).astype(o_ref.dtype)

    return kernel


def _device_vmem_capacity() -> int:
    """Physical VMEM per TensorCore; conservative fallback if the query fails."""
    try:
        return int(pltpu.get_tpu_info().vmem_capacity_bytes)
    except Exception:
        return 64 << 20  # v7x per-core capacity == smallest across generations


def _vmem_limit_bytes(h_in: int, w_in: int, in_itemsize: int, out_itemsize: int) -> int:
    """Explicit per-step VMEM budget for the (image, channel) grid."""
    x_blk = h_in * w_in * in_itemsize          # one input plane
    out_blk = CROP * CROP * out_itemsize       # one output plane
    wh_b = RESIZE * h_in * 4                   # weights (count both at f32 width)
    ww_b = w_in * RESIZE * 4
    inter = (h_in * w_in * 2                   # bf16 copy of x for the MXU
             + max(h_in, w_in) * RESIZE * 4    # f32 stage-1 intermediate
             + 2 * CROP * CROP * 4)            # f32 result + normalize temp
    need = 2 * (x_blk + out_blk + wh_b + ww_b) + inter + (4 << 20)
    cap = _device_vmem_capacity() - (4 << 20)  # headroom for Mosaic internals
    return int(min(max(need, 32 << 20), cap))


def differentiable_clip_transform(x: jax.Array, *, out_dtype=None) -> jax.Array:
    """x: (N, 3, H, W) float (f32 or bf16, values in [0,1]) -> (N, 3, 224, 224)."""
    n, c, h_in, w_in = x.shape
    assert c == 3, "CLIP normalization is defined for 3 channels"
    assert CROP == RESIZE, "center crop is only an identity when CROP == RESIZE"
    assert jnp.issubdtype(x.dtype, jnp.floating), "expected float pixels in [0, 1]"
    if out_dtype is None:
        out_dtype = x.dtype  # bf16 in -> bf16 out (halves writeback for bf16 consumers)

    # Separable bicubic weights.  The stage-1 (larger-dim) weight goes to the MXU
    # in bf16; the stage-2 weight stays f32 so only one bf16 quantization occurs.
    h_first = h_in > w_in
    wh = _bicubic_weight_matrix(h_in, RESIZE)        # (224, H_in) f32
    wwt = _bicubic_weight_matrix(w_in, RESIZE).T     # (W_in, 224) f32
    if h_first:
        wh = wh.astype(jnp.bfloat16)
    else:
        wwt = wwt.astype(jnp.bfloat16)

    # Per-channel normalize constants, scalar-prefetched into SMEM.
    norm = jnp.stack(
        [jnp.asarray(_INV_STD, jnp.float32), jnp.asarray(_NORM_BIAS, jnp.float32)],
        axis=1,
    )  # (3, 2)

    vmem_limit = _vmem_limit_bytes(
        h_in, w_in, x.dtype.itemsize, jnp.dtype(out_dtype).itemsize
    )

    # TODO(synk): planes whose per-channel f32 block exceeds ~half the per-core
    # VMEM budget (~4K frames on v7x) need a K-tiled grid axis over the stage-1
    # contraction dim with a (224, out) accumulator; not implemented here.
    # TODO(synk): for thumbnail inputs (H, W <= ~64) block several images per
    # grid step to amortize the ~0.35 us per-step pipeline overhead.
    return pl.pallas_call(
        _make_kernel(h_first),
        out_shape=jax.ShapeDtypeStruct((n, 3, CROP, CROP), out_dtype),
        grid_spec=pltpu.PrefetchScalarGridSpec(
            num_scalar_prefetch=1,           # norm (3, 2) -> SMEM
            grid=(n, 3),
            in_specs=[
                pl.BlockSpec((pl.Squeezed(), pl.Squeezed(), h_in, w_in),
                             lambda i, ch, norm_ref: (i, ch, 0, 0)),
                # Weight blocks are grid-invariant.  (pl.Buffered(1) would save one
                # weight buffer of VMEM, but the saving is marginal vs the x block,
                # so default double-buffering is kept for lowering robustness.)
                pl.BlockSpec((RESIZE, h_in), lambda i, ch, norm_ref: (0, 0)),
                pl.BlockSpec((w_in, RESIZE), lambda i, ch, norm_ref: (0, 0)),
            ],
            out_specs=pl.BlockSpec((pl.Squeezed(), pl.Squeezed(), CROP, CROP),
                                   lambda i, ch, norm_ref: (i, ch, 0, 0)),
        ),
        compiler_params=pltpu.CompilerParams(
            # 3N independent steps; both axes parallel -> megacore sharding on v7x.
            dimension_semantics=("parallel", "parallel"),
            vmem_limit_bytes=vmem_limit,
        ),
    )(norm, x, wh, wwt)


if __name__ == "__main__":
    key = jax.random.PRNGKey(0)
    # Small NCHW input; 3 channels required by CLIP mean/std.
    x = jax.random.uniform(key, (2, 3, 16, 16), dtype=jnp.float32)
    y = differentiable_clip_transform(x)
    jax.block_until_ready(y)
    assert y.shape == (2, 3, 224, 224)
    assert y.dtype == jnp.float32
    assert bool(jnp.all(jnp.isfinite(y)))

    # Sanity check: bicubic of a constant image is exact (weights sum to 1), so the
    # output must equal (v - mean) / std per channel (bf16 stage-1 tolerance).
    mean = jnp.asarray(CLIP_MEAN, jnp.float32).reshape(1, 3, 1, 1)
    std = jnp.asarray(CLIP_STD, jnp.float32).reshape(1, 3, 1, 1)
    # Square (W-first path) and portrait (H-first path) shapes.
    for shape, val in (((1, 3, 16, 16), 0.5), ((1, 3, 24, 16), 0.25)):
        xc = jnp.full(shape, val, jnp.float32)
        yc = differentiable_clip_transform(xc)
        jax.block_until_ready(yc)
        expected = (val - mean) / std
        max_err = float(jnp.max(jnp.abs(yc - expected)))
        assert max_err < 0.05, (shape, max_err)

    # bf16 pixels in -> bf16 output (direct MXU load, halved HBM traffic).
    yb = differentiable_clip_transform(x.astype(jnp.bfloat16))
    jax.block_until_ready(yb)
    assert yb.shape == (2, 3, 224, 224)
    assert yb.dtype == jnp.bfloat16
    assert bool(jnp.all(jnp.isfinite(yb.astype(jnp.float32))))

    print("KERNEL_OK")
</pallas_src>

<mosaic_0001>
module attributes {stable_mosaic.version = 11 : i64} {
  func.func @kernel(%arg0: i32, %arg1: i32, %arg2: memref<3x2xf32, #tpu.memory_space<smem>>, %arg3: memref<1x1x16x16xf32, #tpu.memory_space<vmem>>, %arg4: memref<224x16xf32, #tpu.memory_space<vmem>>, %arg5: memref<16x224xbf16, #tpu.memory_space<vmem>>, %arg6: memref<1x1x224x224xf32, #tpu.memory_space<vmem>>) attributes {dimension_semantics = [#tpu.dimension_semantics<parallel>, #tpu.dimension_semantics<parallel>], iteration_bounds = array<i64: 2, 3>, scalar_prefetch = 1 : i64, scratch_operands = 0 : i64, tpu.core_type = #tpu.core_type<tc>, window_params = [{transform_indices = @transform_0, window_bounds = array<i64: 1, 1, 16, 16>}, {pipeline_mode = #tpu.pipeline_mode<synchronous>, transform_indices = @transform_1, window_bounds = array<i64: 224, 16>}, {pipeline_mode = #tpu.pipeline_mode<synchronous>, transform_indices = @transform_2, window_bounds = array<i64: 16, 224>}, {transform_indices = @transform_3, window_bounds = array<i64: 1, 1, 224, 224>}]} {
    %c0 = arith.constant 0 : index
    %c0_0 = arith.constant 0 : index
    %c0_1 = arith.constant 0 : index
    %c0_2 = arith.constant 0 : index
    %0 = vector.load %arg3[%c0, %c0_0, %c0_1, %c0_2] : memref<1x1x16x16xf32, #tpu.memory_space<vmem>>, vector<1x1x16x16xf32>
    %1 = vector.shape_cast %0 : vector<1x1x16x16xf32> to vector<16x16xf32>
    %2 = arith.truncf %1 : vector<16x16xf32> to vector<16x16xbf16>
    %c0_3 = arith.constant 0 : index
    %c0_4 = arith.constant 0 : index
    %3 = vector.load %arg5[%c0_3, %c0_4] : memref<16x224xbf16, #tpu.memory_space<vmem>>, vector<16x224xbf16>
    %cst = arith.constant dense<0.000000e+00> : vector<16x224xf32>
    %4 = tpu.matmul %2, %3, %cst {dimension_numbers = #tpu.dot_dimension_numbers<[1], [0], [0], [1], [0, 0, 1, 1], [], []>} : vector<16x16xbf16>, vector<16x224xbf16>, vector<16x224xf32> -> vector<16x224xf32>
    %c0_5 = arith.constant 0 : index
    %c0_6 = arith.constant 0 : index
    %5 = vector.load %arg4[%c0_5, %c0_6] : memref<224x16xf32, #tpu.memory_space<vmem>>, vector<224x16xf32>
    %cst_7 = arith.constant dense<0.000000e+00> : vector<224x224xf32>
    %6 = tpu.matmul %5, %4, %cst_7 {dimension_numbers = #tpu.dot_dimension_numbers<[1], [0], [0], [1], [0, 0, 1, 1], [], []>} : vector<224x16xf32>, vector<16x224xf32>, vector<224x224xf32> -> vector<224x224xf32>
    %7 = arith.index_cast %arg1 : i32 to index
    %c0_8 = arith.constant 0 : index
    %8 = memref.load %arg2[%7, %c0_8] : memref<3x2xf32, #tpu.memory_space<smem>>
    %9 = arith.index_cast %arg1 : i32 to index
    %c1 = arith.constant 1 : index
    %10 = memref.load %arg2[%9, %c1] : memref<3x2xf32, #tpu.memory_space<smem>>
    %11 = vector.broadcast %8 : f32 to vector<224x224xf32>
    %12 = arith.mulf %6, %11 : vector<224x224xf32>
    %13 = vector.broadcast %10 : f32 to vector<224x224xf32>
    %14 = arith.addf %12, %13 : vector<224x224xf32>
    %c0_9 = arith.constant 0 : index
    %c0_10 = arith.constant 0 : index
    %c0_11 = arith.constant 0 : index
    %c0_12 = arith.constant 0 : index
    %15 = vector.load %arg6[%c0_9, %c0_10, %c0_11, %c0_12] : memref<1x1x224x224xf32, #tpu.memory_space<vmem>>, vector<1x1x224x224xf32>
    %16 = vector.shape_cast %15 : vector<1x1x224x224xf32> to vector<224x224xf32>
    %17 = vector.shape_cast %14 : vector<224x224xf32> to vector<1x1x224x224xf32>
    tpu.vector_store %arg6[%c0_9, %c0_10, %c0_11, %c0_12], %17 {strides = array<i32>} : memref<1x1x224x224xf32, #tpu.memory_space<vmem>>, vector<1x1x224x224xf32>,
    return
  }
  func.func @transform_0(%arg0: i32, %arg1: i32, %arg2: memref<3x2xf32, #tpu.memory_space<smem>>) -> (i32, i32, i32, i32) {
    %c0_i32 = arith.constant 0 : i32
    %c0_i32_0 = arith.constant 0 : i32
    %c0_i32_1 = arith.constant 0 : i32
    return %arg0, %arg1, %c0_i32, %c0_i32_0 : i32, i32, i32, i32
  }
  func.func @transform_1(%arg0: i32, %arg1: i32, %arg2: memref<3x2xf32, #tpu.memory_space<smem>>) -> (i32, i32) {
    %c0_i32 = arith.constant 0 : i32
    %c0_i32_0 = arith.constant 0 : i32
    %c0_i32_1 = arith.constant 0 : i32
    return %c0_i32, %c0_i32_0 : i32, i32
  }
  func.func @transform_2(%arg0: i32, %arg1: i32, %arg2: memref<3x2xf32, #tpu.memory_space<smem>>) -> (i32, i32) {
    %c0_i32 = arith.constant 0 : i32
    %c0_i32_0 = arith.constant 0 : i32
    %c0_i32_1 = arith.constant 0 : i32
    return %c0_i32, %c0_i32_0 : i32, i32
  }
  func.func @transform_3(%arg0: i32, %arg1: i32, %arg2: memref<3x2xf32, #tpu.memory_space<smem>>) -> (i32, i32, i32, i32) {
    %c0_i32 = arith.constant 0 : i32
    %c0_i32_0 = arith.constant 0 : i32
    %c0_i32_1 = arith.constant 0 : i32
    return %arg0, %arg1, %c0_i32, %c0_i32_0 : i32, i32, i32, i32
  }
}

</mosaic_0001>

<llo_original>
// kernel: tpu_custom_call.1
$region0: #{tpu_custom_call.1}
  #allocation0 [shape = 'u32[]', space=smem, size = 0x4, offset = 0x4, fixed_abs, tag = 'smem constant byte address 0x4 - core index']
  #allocation1 [shape = 'u32[144,128]{1,0:T(1,128)}', space=vmem, size = 0x12000, scoped, tag = 'internal scratch']
  #allocation2 [shape = 's32[1]{0}', space=sflag, size = 0x4, scoped, tag = 'scoped memory for tpu_custom_call.1']
  #allocation3 [shape = 'u8[2048]{0}', space=smem, size = 0x800, scoped, tag = 'prefetched SMEM operand 0']
  %s0 = inlined_call_operand.vmem [shape: f32[3,2], index: 0, kind: input, shape index: {}]
  %s1 = inlined_call_operand.hbm [shape: f32[2,3,16,16], index: 1, kind: input, shape index: {}]
  %s2 = inlined_call_operand.vmem [shape: f32[224,16], index: 2, kind: input, shape index: {}]
  %s3 = inlined_call_operand.hbm [shape: bf16[16,224], index: 3, kind: input, shape index: {}]
  %s4 = inlined_call_operand.hbm [shape: f32[2,3,224,224], index: 4, kind: output, shape index: {}]
  %s5 = sld [smem:[#allocation0]]
  $region53: #{tpu_custom_call.1} parent=0
    _
  %s7 = ssub.s32 1, %s5
  %s8 = scalar_select 0, %s7, %s5
  %s9 = sshll.u32 %s0, 4
  %s10 = int_to_ptr.vmem [resolvable:$true] %s9
  %12 = dma.vmem_to_smem %s10, 64, [#allocation3], [#allocation2]
  %13 = dma.done [#allocation2], 64
  %14 = sfence
  $region1: #{tpu_custom_call.1} parent=0
    #allocation4 [shape = 'u8[16384]{0}', space=vmem, size = 0x4000, scoped, tag = 'input window, operand 1']
    #allocation5 [shape = 's32[2]{0}', space=sflag, size = 0x8, scoped, tag = 'scoped memory for tpu_custom_call.1']
    #allocation6 [shape = 's32[2]{0}', space=sflag, size = 0x8, scoped, tag = 'scoped memory for tpu_custom_call.1']
    #allocation7 [shape = 'u8[8192]{0}', space=vmem, size = 0x2000, scoped, tag = 'input window, operand 3, single buffered']
    #allocation8 [shape = 's32[1]{0}', space=sflag, size = 0x4, scoped, tag = 'scoped memory for tpu_custom_call.1']
    #allocation9 [shape = 'u8[458752]{0}', space=vmem, size = 0x70000, scoped, tag = 'output window, operand 0']
    %15 = vsyncpa [#allocation5], 0
    %s16 = scalar_lea.sflag [#allocation5], 1
    %17 = vsyncpa %s16, 0
    %18 = vsyncpa [#allocation8], 0
    %19 = vsyncpa [#allocation6], 0
    %s20 = scalar_lea.sflag [#allocation6], 1
    %21 = vsyncpa %s20, 0
    loop: start=0, step=1, limit=8
    $region2: #{tpu_custom_call.1} parent=1 // loop_pre_header
      _
    $region3: #{tpu_custom_call.1} parent=1 // loop_header
      %s23 = sphi 0, %s27
      %p24 = scmp.ge.s32.totalorder %s23, 8
      %s30 = sphi 0, %s42
      %s31 = sphi 0, %s38
      %s32 = sphi 0, %s30
      %s33 = sphi 0, %s31
      %s34 = sphi 0, %s32
      %s35 = sphi 0, %s33
      %s47 = sphi 0, %s49
      %s50 = sphi 0, %s47
      %s51 = sphi 0, %s50
      %s67 = sphi 0, %s51
      %s71 = sphi 0, %s71
      %s73 = sphi 0, %s71
      %s74 = sphi 0, %s73
      %s88 = sphi 0, %s74
      %s92 = sphi 0, %s92
      %s94 = sphi 0, %s92
      %s95 = sphi 0, %s94
      %s109 = sphi 0, %s95
      %s117 = sphi 0, %s119
      %s120 = sphi 0, %s117
      %s121 = sphi 0, %s120
      %s137 = sphi 0, %s121
    $region4: #{tpu_custom_call.1} parent=1 // loop_header_branch
      %26 = sbr.rel (%p24) target = $region8
    $region5: #{tpu_custom_call.1} parent=1 // loop_body
      %s28 = ssub.s32 %s23, 1
      %s29 = ssub.s32 %s23, 2
      %s36 = sadd.s32 1, %s31
      %p37 = scmp.ge.s32.totalorder %s36, 3
      %s38 = scalar_select %p37, 0, %s36
      %s39 = sadd.s32 1, %s30
      %s40 = scalar_select %p37, %s39, %s30
      %p41 = scmp.ge.s32.totalorder %s40, 2
      %s42 = scalar_select %p41, 0, %s40
      %s43 = ssub.s32 %s30, %s42
      %s44 = ssub.s32 %s31, %s38
      %s45 = sor.u32 %s43, %s44
      %p46 = scmp.eq.s32.totalorder %s45, 0
      %s48 = sadd.s32 %s47, 1
      %s49 = scalar_select %p46, %s47, %s48
      %p52 = pneg %p46
      %p53 = scmp.eq.s32.totalorder %s23, 5
      %p54 = por %p52, %p53
      %p55 = scmp.ne.s32.totalorder %s47, %s50
      %p56 = scmp.eq.s32.totalorder %s23, 0
      %p57 = por %p55, %p56
      %p58 = scmp.ne.s32.totalorder %s47, %s50
      %p59 = scmp.eq.s32.totalorder %s28, 5
      %p60 = por %p58, %p59
      %p61 = scmp.ne.s32.totalorder %s50, %s51
      %p62 = scmp.eq.s32.totalorder %s28, 0
      %p63 = por %p61, %p62
      %p64 = scmp.ne.s32.totalorder %s50, %s51
      %p65 = scmp.eq.s32.totalorder %s29, 5
      %p66 = por %p64, %p65
      %p68 = scmp.ne.s32.totalorder %s51, %s67
      %p69 = scmp.eq.s32.totalorder %s29, 0
      %p70 = por %p68, %p69
      %s72 = sadd.s32 %s71, 1
      %p75 = scmp.eq.s32.totalorder %s23, 5
      %p76 = scmp.ne.s32.totalorder %s71, %s73
      %p77 = scmp.eq.s32.totalorder %s23, 0
      %p78 = por %p76, %p77
      %p79 = scmp.ne.s32.totalorder %s71, %s73
      %p80 = scmp.eq.s32.totalorder %s28, 5
      %p81 = por %p79, %p80
      %p82 = scmp.ne.s32.totalorder %s73, %s74
      %p83 = scmp.eq.s32.totalorder %s28, 0
      %p84 = por %p82, %p83
      %p85 = scmp.ne.s32.totalorder %s73, %s74
      %p86 = scmp.eq.s32.totalorder %s29, 5
      %p87 = por %p85, %p86
      %p89 = scmp.ne.s32.totalorder %s74, %s88
      %p90 = scmp.eq.s32.totalorder %s29, 0
      %p91 = por %p89, %p90
      %s93 = sadd.s32 %s92, 1
      %p96 = scmp.eq.s32.totalorder %s23, 5
      %p97 = scmp.ne.s32.totalorder %s92, %s94
      %p98 = scmp.eq.s32.totalorder %s23, 0
      %p99 = por %p97, %p98
      %p100 = scmp.ne.s32.totalorder %s92, %s94
      %p101 = scmp.eq.s32.totalorder %s28, 5
      %p102 = por %p100, %p101
      %p103 = scmp.ne.s32.totalorder %s94, %s95
      %p104 = scmp.eq.s32.totalorder %s28, 0
      %p105 = por %p103, %p104
      %p106 = scmp.ne.s32.totalorder %s94, %s95
      %p107 = scmp.eq.s32.totalorder %s29, 5
      %p108 = por %p106, %p107
      %p110 = scmp.ne.s32.totalorder %s95, %s109
      %p111 = scmp.eq.s32.totalorder %s29, 0
      %p112 = por %p110, %p111
      %s113 = ssub.s32 %s30, %s42
      %s114 = ssub.s32 %s31, %s38
      %s115 = sor.u32 %s113, %s114
      %p116 = scmp.eq.s32.totalorder %s115, 0
      %s118 = sadd.s32 %s117, 1
      %s119 = scalar_select %p116, %s117, %s118
      %p122 = pneg %p116
      %p123 = scmp.eq.s32.totalorder %s23, 5
      %p124 = por %p122, %p123
      %p125 = scmp.ne.s32.totalorder %s117, %s120
      %p126 = scmp.eq.s32.totalorder %s23, 0
      %p127 = por %p125, %p126
      %p128 = scmp.ne.s32.totalorder %s117, %s120
      %p129 = scmp.eq.s32.totalorder %s28, 5
      %p130 = por %p128, %p129
      %p131 = scmp.ne.s32.totalorder %s120, %s121
      %p132 = scmp.eq.s32.totalorder %s28, 0
      %p133 = por %p131, %p132
      %p134 = scmp.ne.s32.totalorder %s120, %s121
      %p135 = scmp.eq.s32.totalorder %s29, 5
      %p136 = por %p134, %p135
      %p138 = scmp.ne.s32.totalorder %s121, %s137
      %p139 = scmp.eq.s32.totalorder %s29, 0
      %p140 = por %p138, %p139
      %p141 = scmp.le.s32.totalorder 1, %s23
      %p142 = scmp.lt.s32.totalorder %s23, 7
      %p143 = pnand %p141, %p142
      %p144 = pneg %p143
      // Predicated region
      $region9: #{tpu_custom_call.1} parent=5 // pred_check
        _
      $region10: #{tpu_custom_call.1} parent=5 // pred_check_branch
        %146 = sbr.rel (%p143) target = $region12
      $region11: #{tpu_custom_call.1} parent=5 // pred_region
        %s147 = ssub.s32 %s23, 1
        // Predicated region
        $region13: #{tpu_custom_call.1} parent=11 // pred_check
          %p148 = pneg %p84
        $region14: #{tpu_custom_call.1} parent=11 // pred_check_branch
          %150 = sbr.rel (%p148) target = $region16
        $region15: #{tpu_custom_call.1} parent=11 // pred_region
          _
        $region16: #{tpu_custom_call.1} parent=11 // pred_fallthru
          _
        // Predicated region
        $region17: #{tpu_custom_call.1} parent=11 // pred_check
          %p151 = pneg %p105
        $region18: #{tpu_custom_call.1} parent=11 // pred_check_branch
          %153 = sbr.rel (%p151) target = $region20
        $region19: #{tpu_custom_call.1} parent=11 // pred_region
          %s155 = ssub.s32 256, 256
          %156 = vsyncadd [#allocation8], %s155
          %s157 = sshll.u32 [#allocation7], 4
          %s158 = int_to_ptr.vmem [resolvable:$true] %s157
          %163 = dma.hbm_to_vmem [thread:$0]  %s3, 256, %s158, [#allocation8], 128, 128, 8
        $region20: #{tpu_custom_call.1} parent=11 // pred_fallthru
          _
      $region12: #{tpu_custom_call.1} parent=5 // pred_fallthru
        _
      %p164 = scmp.lt.s32.totalorder %s23, 6
      // Predicated region
      $region21: #{tpu_custom_call.1} parent=5 // pred_check
        %p165 = pneg %p164
      $region22: #{tpu_custom_call.1} parent=5 // pred_check_branch
        %167 = sbr.rel (%p165) target = $region24
      $region23: #{tpu_custom_call.1} parent=5 // pred_region
        // Predicated region
        $region25: #{tpu_custom_call.1} parent=23 // pred_check
          %p168 = pneg %p57
        $region26: #{tpu_custom_call.1} parent=23 // pred_check_branch
          %170 = sbr.rel (%p168) target = $region28
        $region27: #{tpu_custom_call.1} parent=23 // pred_region
          %s171 = sand.u32 %s47, 1
          %s172 = scalar_lea.sflag [#allocation5], %s171
          %s173 = sand.u32 %s47, 1
          %s174 = smul.addr %s173, 16
          %s175 = scalar_lea.vmem [#allocation4], %s174
          %s177 = ssub.s32 256, 256
          %178 = vsyncadd %s172, %s177
          %s179 = smul.addr %s31, 2
          %s180 = smul.addr %s30, 6
          %s181 = sadd.s32 %s179, %s180
          %s182 = smul.addr %s181, 128
          %s183 = scalar_lea.hbm %s1, %s182
          %s184 = sshll.u32 %s175, 4
          %s185 = int_to_ptr.vmem [resolvable:$true] %s184
          %190 = dma.hbm_to_vmem [thread:$0]  %s183, 256, %s185, %s172, 128, 128, 8
        $region28: #{tpu_custom_call.1} parent=23 // pred_fallthru
          _
      $region24: #{tpu_custom_call.1} parent=5 // pred_fallthru
        _
      %p191 = scmp.le.s32.totalorder 1, %s23
      %p192 = scmp.lt.s32.totalorder %s23, 7
      %p193 = pnand %p191, %p192
      %p194 = pneg %p193
      // Predicated region
      $region29: #{tpu_custom_call.1} parent=5 // pred_check
        _
      $region30: #{tpu_custom_call.1} parent=5 // pred_check_branch
        %196 = sbr.rel (%p193) target = $region32
      $region31: #{tpu_custom_call.1} parent=5 // pred_region
        %s197 = ssub.s32 %s23, 1
        %s198 = sand.u32 %s50, 1
        %s199 = scalar_lea.sflag [#allocation5], %s198
        %s200 = sand.u32 %s50, 1
        %s201 = smul.addr %s200, 16
        %s202 = scalar_lea.vmem [#allocation4], %s201
        // Predicated region
        $region33: #{tpu_custom_call.1} parent=31 // pred_check
          %p203 = pneg %p63
        $region34: #{tpu_custom_call.1} parent=31 // pred_check_branch
          %205 = sbr.rel (%p203) target = $region36
        $region35: #{tpu_custom_call.1} parent=31 // pred_region
          %206 = dma.done %s199, 256
        $region36: #{tpu_custom_call.1} parent=31 // pred_fallthru
          _
        // Predicated region
        $region37: #{tpu_custom_call.1} parent=31 // pred_check
          %p207 = pneg %p105
        $region38: #{tpu_custom_call.1} parent=31 // pred_check_branch
          %209 = sbr.rel (%p207) target = $region40
        $region39: #{tpu_custom_call.1} parent=31 // pred_region
          %210 = dma.done [#allocation8], 256
        $region40: #{tpu_custom_call.1} parent=31 // pred_fallthru
          _
        %s211 = sand.u32 %s50, 1
        %s212 = scalar_lea.sflag [#allocation5], %s211
        %s213 = sand.u32 %s50, 1
        %s214 = smul.addr %s213, 16
        %s215 = scalar_lea.vmem [#allocation4], %s214
        %p216 = pneg %p63
        %p217 = pneg %p60
        %p218 = pneg %p84
        %p219 = pneg %p81
        %p220 = pneg %p105
        %p221 = pneg %p102
        %p222 = pneg %p133
        %p223 = pneg %p130
        %s224 = sand.u32 %s120, 1
        %s225 = scalar_lea.sflag [#allocation6], %s224
        %s226 = sand.u32 %s120, 1
        %s227 = smul.addr %s226, 448
        %s228 = scalar_lea.vmem [#allocation9], %s227
        %v230 = vld [vmem:[%s202] sm:$0xff]
        %v231 = vld [vmem:[%s202 + $0x8] sm:$0xff]
        %v232 = vpack.c.bf16 %v231, %v230
        %v233 = vld [vmem:[#allocation7] sm:$0xff]
        %v234 = vld [vmem:[#allocation7 + $0x8] sm:$0xff]
        %v237 = vunpack.c.l.b16 %v233
        %v238 = vunpack.c.h.b16 %v233
        %v239 = vunpack.c.l.b16 %v234
        %v240 = vunpack.c.h.b16 %v234
        %v241 = vpack.c.b16 %v239, %v237
        %v242 = vpack.c.b16 %v240, %v238
        %vm245 = vcmask 130048
        %v247 = vsel %vm245, %v232, 0
        %249 = vmatprep.subr.bf16.mxu0 %v242
        %250 = vmatpush1.bf16.msra.mxu0 %v241
        %251 = vmatprep.subr.bf16.mxu0 0
        %252 = vmatpush1.bf16.msra.mxu0 0
        %253 = vmatprep.subr.bf16.mxu0 0
        %254 = vmatpush1.bf16.msra.mxu0 0
        %255 = vmatprep.subr.bf16.mxu0 0
        %256 = vmatpush1.bf16.msra.mxu0 0
        %257 = vmatprep.subr.bf16.mxu0 0
        %258 = vmatpush1.bf16.msra.mxu0 0
        %259 = vmatprep.subr.bf16.mxu0 0
        %260 = vmatpush1.bf16.msra.mxu0 0
        %261 = vmatprep.subr.bf16.mxu0 0
        %262 = vmatpush1.bf16.msra.mxu0 0
        %263 = vmatprep.subr.bf16.mxu0 0
        %264 = vmatpush1.bf16.msra.mxu0 0
        %265 = vmatprep.subr.bf16.mxu0 0
        %266 = vmatpush1.bf16.msra.mxu0 0
        %267 = vmatprep.subr.bf16.mxu0 0
        %268 = vmatpush1.bf16.msra.mxu0 0
        %269 = vmatprep.subr.bf16.mxu0 0
        %270 = vmatpush1.bf16.msra.mxu0 0
        %271 = vmatprep.subr.bf16.mxu0 0
        %272 = vmatpush1.bf16.msra.mxu0 0
        %273 = vmatprep.subr.bf16.mxu0 0
        %274 = vmatpush1.bf16.msra.mxu0 0
        %275 = vmatprep.subr.bf16.mxu0 0
        %276 = vmatpush1.bf16.msra.mxu0 0
        %277 = vmatprep.subr.bf16.mxu0 0
        %278 = vmatpush1.bf16.msra.mxu0 0
        %279 = vmatprep.subr.bf16.mxu0 0
        %280 = vmatpush1.bf16.msra.mxu0 0
        %281 = vmatprep.mubr.bf16.mxu0 0
        %282 = vmatmul.mubr.bf16.gmra.mrb[0].mxu0 %v247
        %v283 = vpop.f32.mrb[0].mxu0
        %v284 = vadd.f32 0.0, %v283
        %v285 = vpop.f32.mrb[0].mxu0
        %v286 = vadd.f32 0.0, %v285
        %v287 = vpop.f32.mrb[0].mxu0
        %v288 = vadd.f32 0.0, %v287
        %v289 = vpop.f32.mrb[0].mxu0
        %v290 = vadd.f32 0.0, %v289
        %291 = vdwg.mxu0
        %v292 = vld [vmem:[%s2] sm:$0xff]
        %v293 = vld [vmem:[%s2 + $0x8] sm:$0xff]
        %v294 = vld [vmem:[%s2 + $0x10] sm:$0xff]
        %v295 = vld [vmem:[%s2 + $0x18] sm:$0xff]
        %v296 = vld [vmem:[%s2 + $0x20] sm:$0xff]
        %v297 = vld [vmem:[%s2 + $0x28] sm:$0xff]
        %v298 = vld [vmem:[%s2 + $0x30] sm:$0xff]
        %v299 = vld [vmem:[%s2 + $0x38] sm:$0xff]
        %v300 = vld [vmem:[%s2 + $0x40] sm:$0xff]
        %v301 = vld [vmem:[%s2 + $0x48] sm:$0xff]
        %v302 = vld [vmem:[%s2 + $0x50] sm:$0xff]
        %v303 = vld [vmem:[%s2 + $0x58] sm:$0xff]
        %v304 = vld [vmem:[%s2 + $0x60] sm:$0xff]
        %v305 = vld [vmem:[%s2 + $0x68] sm:$0xff]
        %v306 = vld [vmem:[%s2 + $0x70] sm:$0xff]
        %v307 = vld [vmem:[%s2 + $0x78] sm:$0xff]
        %v308 = vld [vmem:[%s2 + $0x80] sm:$0xff]
        %v309 = vld [vmem:[%s2 + $0x88] sm:$0xff]
        %v310 = vld [vmem:[%s2 + $0x90] sm:$0xff]
        %v311 = vld [vmem:[%s2 + $0x98] sm:$0xff]
        %v312 = vld [vmem:[%s2 + $0xa0] sm:$0xff]
        %v313 = vld [vmem:[%s2 + $0xa8] sm:$0xff]
        %v314 = vld [vmem:[%s2 + $0xb0] sm:$0xff]
        %v315 = vld [vmem:[%s2 + $0xb8] sm:$0xff]
        %v316 = vld [vmem:[%s2 + $0xc0] sm:$0xff]
        %v317 = vld [vmem:[%s2 + $0xc8] sm:$0xff]
        %v318 = vld [vmem:[%s2 + $0xd0] sm:$0xff]
        %v319 = vld [vmem:[%s2 + $0xd8] sm:$0xff]
        %v321 = vsel %vm245, %v292, 0
        %v324 = vsel %vm245, %v293, 0
        %v327 = vsel %vm245, %v294, 0
        %v330 = vsel %vm245, %v295, 0
        %v333 = vsel %vm245, %v296, 0
        %v336 = vsel %vm245, %v297, 0
        %v339 = vsel %vm245, %v298, 0
        %v342 = vsel %vm245, %v299, 0
        %v345 = vsel %vm245, %v300, 0
        %v348 = vsel %vm245, %v301, 0
        %v351 = vsel %vm245, %v302, 0
        %v354 = vsel %vm245, %v303, 0
        %v357 = vsel %vm245, %v304, 0
        %v360 = vsel %vm245, %v305, 0
        %v363 = vsel %vm245, %v306, 0
        %v366 = vsel %vm245, %v307, 0
        %v369 = vsel %vm245, %v308, 0
        %v372 = vsel %vm245, %v309, 0
        %v375 = vsel %vm245, %v310, 0
        %v378 = vsel %vm245, %v311, 0
        %v381 = vsel %vm245, %v312, 0
        %v384 = vsel %vm245, %v313, 0
        %v387 = vsel %vm245, %v314, 0
        %v390 = vsel %vm245, %v315, 0
        %v393 = vsel %vm245, %v316, 0
        %v396 = vsel %vm245, %v317, 0
        %v399 = vsel %vm245, %v318, 0
        %v402 = vsel %vm245, %v319, 0
        %404 = vmatprep.subr.mxu0 %v286
        %405 = vmatpush1.msra.mxu0 %v284
        %406 = vmatprep.subr.mxu0 %v290
        %407 = vmatpush1.msra.mxu0 %v288
        %408 = vmatprep.subr.mxu0 0.0
        %409 = vmatpush1.msra.mxu0 0.0
        %410 = vmatprep.subr.mxu0 0.0
        %411 = vmatpush1.msra.mxu0 0.0
        %412 = vmatprep.subr.mxu0 0.0
        %413 = vmatpush1.msra.mxu0 0.0
        %414 = vmatprep.subr.mxu0 0.0
        %415 = vmatpush1.msra.mxu0 0.0
        %416 = vmatprep.subr.mxu0 0.0
        %417 = vmatpush1.msra.mxu0 0.0
        %418 = vmatprep.subr.mxu0 0.0
        %419 = vmatpush1.msra.mxu0 0.0
        %420 = vmatprep.subr.mxu0 0.0
        %421 = vmatpush1.msra.mxu0 0.0
        %422 = vmatprep.subr.mxu0 0.0
        %423 = vmatpush1.msra.mxu0 0.0
        %424 = vmatprep.subr.mxu0 0.0
        %425 = vmatpush1.msra.mxu0 0.0
        %426 = vmatprep.subr.mxu0 0.0
        %427 = vmatpush1.msra.mxu0 0.0
        %428 = vmatprep.subr.mxu0 0.0
        %429 = vmatpush1.msra.mxu0 0.0
        %430 = vmatprep.subr.mxu0 0.0
        %431 = vmatpush1.msra.mxu0 0.0
        %432 = vmatprep.subr.mxu0 0.0
        %433 = vmatpush1.msra.mxu0 0.0
        %434 = vmatprep.subr.mxu0 0.0
        %435 = vmatpush1.msra.mxu0 0.0
        %436 = vmatprep.subr.mxu0 0.0
        %437 = vmatpush1.msra.mxu0 0.0
        %438 = vmatprep.subr.mxu0 0.0
        %439 = vmatpush1.msra.mxu0 0.0
        %440 = vmatprep.subr.mxu0 0.0
        %441 = vmatpush1.msra.mxu0 0.0
        %442 = vmatprep.subr.mxu0 0.0
        %443 = vmatpush1.msra.mxu0 0.0
        %444 = vmatprep.subr.mxu0 0.0
        %445 = vmatpush1.msra.mxu0 0.0
        %446 = vmatprep.subr.mxu0 0.0
        %447 = vmatpush1.msra.mxu0 0.0
        %448 = vmatprep.subr.mxu0 0.0
        %449 = vmatpush1.msra.mxu0 0.0
        %450 = vmatprep.subr.mxu0 0.0
        %451 = vmatpush1.msra.mxu0 0.0
        %452 = vmatprep.subr.mxu0 0.0
        %453 = vmatpush1.msra.mxu0 0.0
        %454 = vmatprep.subr.mxu0 0.0
        %455 = vmatpush1.msra.mxu0 0.0
        %456 = vmatprep.subr.mxu0 0.0
        %457 = vmatpush1.msra.mxu0 0.0
        %458 = vmatprep.subr.mxu0 0.0
        %459 = vmatpush1.msra.mxu0 0.0
        %460 = vmatprep.subr.mxu0 0.0
        %461 = vmatpush1.msra.mxu0 0.0
        %462 = vmatprep.subr.mxu0 0.0
        %463 = vmatpush1.msra.mxu0 0.0
        %464 = vmatprep.subr.mxu0 0.0
        %465 = vmatpush1.msra.mxu0 0.0
        %466 = vmatprep.subr.mxu0 0.0
        %467 = vmatpush1.msra.mxu0 0.0
        %468 = vmatprep.mubr.f32.mxu0 0.0
        %469 = vmatmul.mubr.f32.gmra.mrb[0].mxu0 %v321
        %v470 = vpop.f32.mrb[0].mxu0
        %v471 = vadd.f32 0.0, %v470
        %v472 = vpop.f32.mrb[0].mxu0
        %v473 = vadd.f32 0.0, %v472
        %474 = vmatprep.mubr.f32.mxu0 0.0
        %475 = vmatmul.mubr.f32.gmra.mrb[0].mxu0 %v324
        %v476 = vpop.f32.mrb[0].mxu0
        %v477 = vadd.f32 0.0, %v476
        %v478 = vpop.f32.mrb[0].mxu0
        %v479 = vadd.f32 0.0, %v478
        %480 = vmatprep.mubr.f32.mxu0 0.0
        %481 = vmatmul.mubr.f32.gmra.mrb[0].mxu0 %v327
        %v482 = vpop.f32.mrb[0].mxu0
        %v483 = vadd.f32 0.0, %v482
        %v484 = vpop.f32.mrb[0].mxu0
        %v485 = vadd.f32 0.0, %v484
        %486 = vmatprep.mubr.f32.mxu0 0.0
        %487 = vmatmul.mubr.f32.gmra.mrb[0].mxu0 %v330
        %v488 = vpop.f32.mrb[0].mxu0
        %v489 = vadd.f32 0.0, %v488
        %v490 = vpop.f32.mrb[0].mxu0
        %v491 = vadd.f32 0.0, %v490
        %492 = vmatprep.mubr.f32.mxu0 0.0
        %493 = vmatmul.mubr.f32.gmra.mrb[0].mxu0 %v333
        %v494 = vpop.f32.mrb[0].mxu0
        %v495 = vadd.f32 0.0, %v494
        %v496 = vpop.f32.mrb[0].mxu0
        %v497 = vadd.f32 0.0, %v496
        %498 = vmatprep.mubr.f32.mxu0 0.0
        %499 = vmatmul.mubr.f32.gmra.mrb[0].mxu0 %v336
        %v500 = vpop.f32.mrb[0].mxu0
        %v501 = vadd.f32 0.0, %v500
        %v502 = vpop.f32.mrb[0].mxu0
        %v503 = vadd.f32 0.0, %v502
        %504 = vmatprep.mubr.f32.mxu0 0.0
        %505 = vmatmul.mubr.f32.gmra.mrb[0].mxu0 %v339
        %v506 = vpop.f32.mrb[0].mxu0
        %v507 = vadd.f32 0.0, %v506
        %v508 = vpop.f32.mrb[0].mxu0
        %v509 = vadd.f32 0.0, %v508
        %510 = vmatprep.mubr.f32.mxu0 0.0
        %511 = vmatmul.mubr.f32.gmra.mrb[0].mxu0 %v342
        %v512 = vpop.f32.mrb[0].mxu0
        %v513 = vadd.f32 0.0, %v512
        %v514 = vpop.f32.mrb[0].mxu0
        %v515 = vadd.f32 0.0, %v514
        %516 = vmatprep.mubr.f32.mxu0 0.0
        %517 = vmatmul.mubr.f32.gmra.mrb[0].mxu0 %v345
        %v518 = vpop.f32.mrb[0].mxu0
        %v519 = vadd.f32 0.0, %v518
        %v520 = vpop.f32.mrb[0].mxu0
        %v521 = vadd.f32 0.0, %v520
        %522 = vmatprep.mubr.f32.mxu0 0.0
        %523 = vmatmul.mubr.f32.gmra.mrb[0].mxu0 %v348
        %v524 = vpop.f32.mrb[0].mxu0
        %v525 = vadd.f32 0.0, %v524
        %v526 = vpop.f32.mrb[0].mxu0
        %v527 = vadd.f32 0.0, %v526
        %528 = vmatprep.mubr.f32.mxu0 0.0
        %529 = vmatmul.mubr.f32.gmra.mrb[0].mxu0 %v351
        %v530 = vpop.f32.mrb[0].mxu0
        %v531 = vadd.f32 0.0, %v530
        %v532 = vpop.f32.mrb[0].mxu0
        %v533 = vadd.f32 0.0, %v532
        %534 = vmatprep.mubr.f32.mxu0 0.0
        %535 = vmatmul.mubr.f32.gmra.mrb[0].mxu0 %v354
        %v536 = vpop.f32.mrb[0].mxu0
        %v537 = vadd.f32 0.0, %v536
        %v538 = vpop.f32.mrb[0].mxu0
        %v539 = vadd.f32 0.0, %v538
        %540 = vmatprep.mubr.f32.mxu0 0.0
        %541 = vmatmul.mubr.f32.gmra.mrb[0].mxu0 %v357
        %v542 = vpop.f32.mrb[0].mxu0
        %v543 = vadd.f32 0.0, %v542
        %v544 = vpop.f32.mrb[0].mxu0
        %v545 = vadd.f32 0.0, %v544
        %546 = vmatprep.mubr.f32.mxu0 0.0
        %547 = vmatmul.mubr.f32.gmra.mrb[0].mxu0 %v360
        %v548 = vpop.f32.mrb[0].mxu0
        %v549 = vadd.f32 0.0, %v548
        %v550 = vpop.f32.mrb[0].mxu0
        %v551 = vadd.f32 0.0, %v550
        %552 = vmatprep.mubr.f32.mxu0 0.0
        %553 = vmatmul.mubr.f32.gmra.mrb[0].mxu0 %v363
        %v554 = vpop.f32.mrb[0].mxu0
        %v555 = vadd.f32 0.0, %v554
        %v556 = vpop.f32.mrb[0].mxu0
        %v557 = vadd.f32 0.0, %v556
        %558 = vmatprep.mubr.f32.mxu0 0.0
        %559 = vmatmul.mubr.f32.gmra.mrb[0].mxu0 %v366
        %v560 = vpop.f32.mrb[0].mxu0
        %v561 = vadd.f32 0.0, %v560
        %v562 = vpop.f32.mrb[0].mxu0
        %v563 = vadd.f32 0.0, %v562
        %564 = vmatprep.mubr.f32.mxu0 0.0
        %565 = vmatmul.mubr.f32.gmra.mrb[0].mxu0 %v369
        %v566 = vpop.f32.mrb[0].mxu0
        %v567 = vadd.f32 0.0, %v566
        %v568 = vpop.f32.mrb[0].mxu0
        %v569 = vadd.f32 0.0, %v568
        %570 = vmatprep.mubr.f32.mxu0 0.0
        %571 = vmatmul.mubr.f32.gmra.mrb[0].mxu0 %v372
        %v572 = vpop.f32.mrb[0].mxu0
        %v573 = vadd.f32 0.0, %v572
        %v574 = vpop.f32.mrb[0].mxu0
        %v575 = vadd.f32 0.0, %v574
        %576 = vmatprep.mubr.f32.mxu0 0.0
        %577 = vmatmul.mubr.f32.gmra.mrb[0].mxu0 %v375
        %v578 = vpop.f32.mrb[0].mxu0
        %v579 = vadd.f32 0.0, %v578
        %v580 = vpop.f32.mrb[0].mxu0
        %v581 = vadd.f32 0.0, %v580
        %582 = vmatprep.mubr.f32.mxu0 0.0
        %583 = vmatmul.mubr.f32.gmra.mrb[0].mxu0 %v378
        %v584 = vpop.f32.mrb[0].mxu0
        %v585 = vadd.f32 0.0, %v584
        %v586 = vpop.f32.mrb[0].mxu0
        %v587 = vadd.f32 0.0, %v586
        %588 = vmatprep.mubr.f32.mxu0 0.0
        %589 = vmatmul.mubr.f32.gmra.mrb[0].mxu0 %v381
        %v590 = vpop.f32.mrb[0].mxu0
        %v591 = vadd.f32 0.0, %v590
        %v592 = vpop.f32.mrb[0].mxu0
        %v593 = vadd.f32 0.0, %v592
        %594 = vmatprep.mubr.f32.mxu0 0.0
        %595 = vmatmul.mubr.f32.gmra.mrb[0].mxu0 %v384
        %v596 = vpop.f32.mrb[0].mxu0
        %v597 = vadd.f32 0.0, %v596
        %v598 = vpop.f32.mrb[0].mxu0
        %v599 = vadd.f32 0.0, %v598
        %600 = vmatprep.mubr.f32.mxu0 0.0
        %601 = vmatmul.mubr.f32.gmra.mrb[0].mxu0 %v387
        %v602 = vpop.f32.mrb[0].mxu0
        %v603 = vadd.f32 0.0, %v602
        %v604 = vpop.f32.mrb[0].mxu0
        %v605 = vadd.f32 0.0, %v604
        %606 = vmatprep.mubr.f32.mxu0 0.0
        %607 = vmatmul.mubr.f32.gmra.mrb[0].mxu0 %v390
        %v608 = vpop.f32.mrb[0].mxu0
        %v609 = vadd.f32 0.0, %v608
        %v610 = vpop.f32.mrb[0].mxu0
        %v611 = vadd.f32 0.0, %v610
        %612 = vmatprep.mubr.f32.mxu0 0.0
        %613 = vmatmul.mubr.f32.gmra.mrb[0].mxu0 %v393
        %v614 = vpop.f32.mrb[0].mxu0
        %v615 = vadd.f32 0.0, %v614
        %v616 = vpop.f32.mrb[0].mxu0
        %v617 = vadd.f32 0.0, %v616
        %618 = vmatprep.mubr.f32.mxu0 0.0
        %619 = vmatmul.mubr.f32.gmra.mrb[0].mxu0 %v396
        %v620 = vpop.f32.mrb[0].mxu0
        %v621 = vadd.f32 0.0, %v620
        %v622 = vpop.f32.mrb[0].mxu0
        %v623 = vadd.f32 0.0, %v622
        %624 = vmatprep.mubr.f32.mxu0 0.0
        %625 = vmatmul.mubr.f32.gmra.mrb[0].mxu0 %v399
        %v626 = vpop.f32.mrb[0].mxu0
        %v627 = vadd.f32 0.0, %v626
        %v628 = vpop.f32.mrb[0].mxu0
        %v629 = vadd.f32 0.0, %v628
        %630 = vmatprep.mubr.f32.mxu0 0.0
        %631 = vmatmul.mubr.f32.gmra.mrb[0].mxu0 %v402
        %v632 = vpop.f32.mrb[0].mxu0
        %v633 = vadd.f32 0.0, %v632
        %v634 = vpop.f32.mrb[0].mxu0
        %v635 = vadd.f32 0.0, %v634
        %636 = vdwg.mxu0
        %s637 = smul.u32 %s33, 128
        %s638 = sld [smem:[#allocation3 + %s637]]
        %s639 = sadd.s32 %s637, 1
        %s640 = sld [smem:[#allocation3 + %s639]]
        %v641 = vstv %s638
        %v642 = vmul.f32 %v471, %v641
        %v643 = vmul.f32 %v473, %v641
        %v644 = vmul.f32 %v477, %v641
        %v645 = vmul.f32 %v479, %v641
        %v646 = vmul.f32 %v483, %v641
        %v647 = vmul.f32 %v485, %v641
        %v648 = vmul.f32 %v489, %v641
        %v649 = vmul.f32 %v491, %v641
        %v650 = vmul.f32 %v495, %v641
        %v651 = vmul.f32 %v497, %v641
        %v652 = vmul.f32 %v501, %v641
        %v653 = vmul.f32 %v503, %v641
        %v654 = vmul.f32 %v507, %v641
        %v655 = vmul.f32 %v509, %v641
        %v656 = vmul.f32 %v513, %v641
        %v657 = vmul.f32 %v515, %v641
        %v658 = vmul.f32 %v519, %v641
        %v659 = vmul.f32 %v521, %v641
        %v660 = vmul.f32 %v525, %v641
        %v661 = vmul.f32 %v527, %v641
        %v662 = vmul.f32 %v531, %v641
        %v663 = vmul.f32 %v533, %v641
        %v664 = vmul.f32 %v537, %v641
        %v665 = vmul.f32 %v539, %v641
        %v666 = vmul.f32 %v543, %v641
        %v667 = vmul.f32 %v545, %v641
        %v668 = vmul.f32 %v549, %v641
        %v669 = vmul.f32 %v551, %v641
        %v670 = vmul.f32 %v555, %v641
        %v671 = vmul.f32 %v557, %v641
        %v672 = vmul.f32 %v561, %v641
        %v673 = vmul.f32 %v563, %v641
        %v674 = vmul.f32 %v567, %v641
        %v675 = vmul.f32 %v569, %v641
        %v676 = vmul.f32 %v573, %v641
        %v677 = vmul.f32 %v575, %v641
        %v678 = vmul.f32 %v579, %v641
        %v679 = vmul.f32 %v581, %v641
        %v680 = vmul.f32 %v585, %v641
        %v681 = vmul.f32 %v587, %v641
        %v682 = vmul.f32 %v591, %v641
        %v683 = vmul.f32 %v593, %v641
        %v684 = vmul.f32 %v597, %v641
        %v685 = vmul.f32 %v599, %v641
        %v686 = vmul.f32 %v603, %v641
        %v687 = vmul.f32 %v605, %v641
        %v688 = vmul.f32 %v609, %v641
        %v689 = vmul.f32 %v611, %v641
        %v690 = vmul.f32 %v615, %v641
        %v691 = vmul.f32 %v617, %v641
        %v692 = vmul.f32 %v621, %v641
        %v693 = vmul.f32 %v623, %v641
        %v694 = vmul.f32 %v627, %v641
        %v695 = vmul.f32 %v629, %v641
        %v696 = vmul.f32 %v633, %v641
        %v697 = vmul.f32 %v635, %v641
        %v698 = vstv %s640
        %v699 = vadd.f32 %v642, %v698
        %v700 = vadd.f32 %v643, %v698
        %v701 = vadd.f32 %v644, %v698
        %v702 = vadd.f32 %v645, %v698
        %v703 = vadd.f32 %v646, %v698
        %v704 = vadd.f32 %v647, %v698
        %v705 = vadd.f32 %v648, %v698
        %v706 = vadd.f32 %v649, %v698
        %v707 = vadd.f32 %v650, %v698
        %v708 = vadd.f32 %v651, %v698
        %v709 = vadd.f32 %v652, %v698
        %v710 = vadd.f32 %v653, %v698
        %v711 = vadd.f32 %v654, %v698
        %v712 = vadd.f32 %v655, %v698
        %v713 = vadd.f32 %v656, %v698
        %v714 = vadd.f32 %v657, %v698
        %v715 = vadd.f32 %v658, %v698
        %v716 = vadd.f32 %v659, %v698
        %v717 = vadd.f32 %v660, %v698
        %v718 = vadd.f32 %v661, %v698
        %v719 = vadd.f32 %v662, %v698
        %v720 = vadd.f32 %v663, %v698
        %v721 = vadd.f32 %v664, %v698
        %v722 = vadd.f32 %v665, %v698
        %v723 = vadd.f32 %v666, %v698
        %v724 = vadd.f32 %v667, %v698
        %v725 = vadd.f32 %v668, %v698
        %v726 = vadd.f32 %v669, %v698
        %v727 = vadd.f32 %v670, %v698
        %v728 = vadd.f32 %v671, %v698
        %v729 = vadd.f32 %v672, %v698
        %v730 = vadd.f32 %v673, %v698
        %v731 = vadd.f32 %v674, %v698
        %v732 = vadd.f32 %v675, %v698
        %v733 = vadd.f32 %v676, %v698
        %v734 = vadd.f32 %v677, %v698
        %v735 = vadd.f32 %v678, %v698
        %v736 = vadd.f32 %v679, %v698
        %v737 = vadd.f32 %v680, %v698
        %v738 = vadd.f32 %v681, %v698
        %v739 = vadd.f32 %v682, %v698
        %v740 = vadd.f32 %v683, %v698
        %v741 = vadd.f32 %v684, %v698
        %v742 = vadd.f32 %v685, %v698
        %v743 = vadd.f32 %v686, %v698
        %v744 = vadd.f32 %v687, %v698
        %v745 = vadd.f32 %v688, %v698
        %v746 = vadd.f32 %v689, %v698
        %v747 = vadd.f32 %v690, %v698
        %v748 = vadd.f32 %v691, %v698
        %v749 = vadd.f32 %v692, %v698
        %v750 = vadd.f32 %v693, %v698
        %v751 = vadd.f32 %v694, %v698
        %v752 = vadd.f32 %v695, %v698
        %v753 = vadd.f32 %v696, %v698
        %v754 = vadd.f32 %v697, %v698
        %755 = vst [vmem:[%s228] sm:$0xff] %v699
        %vm756 = vcmask 785408
        %757 = vst.msk [vmem:[%s228 + $0x8] sm:$0xff] %vm756, %v700
        %758 = vst [vmem:[%s228 + $0x10] sm:$0xff] %v701
        %759 = vst.msk [vmem:[%s228 + $0x18] sm:$0xff] %vm756, %v702
        %760 = vst [vmem:[%s228 + $0x20] sm:$0xff] %v703
        %761 = vst.msk [vmem:[%s228 + $0x28] sm:$0xff] %vm756, %v704
        %762 = vst [vmem:[%s228 + $0x30] sm:$0xff] %v705
        %763 = vst.msk [vmem:[%s228 + $0x38] sm:$0xff] %vm756, %v706
        %764 = vst [vmem:[%s228 + $0x40] sm:$0xff] %v707
        %765 = vst.msk [vmem:[%s228 + $0x48] sm:$0xff] %vm756, %v708
        %766 = vst [vmem:[%s228 + $0x50] sm:$0xff] %v709
        %767 = vst.msk [vmem:[%s228 + $0x58] sm:$0xff] %vm756, %v710
        %768 = vst [vmem:[%s228 + $0x60] sm:$0xff] %v711
        %769 = vst.msk [vmem:[%s228 + $0x68] sm:$0xff] %vm756, %v712
        %770 = vst [vmem:[%s228 + $0x70] sm:$0xff] %v713
        %771 = vst.msk [vmem:[%s228 + $0x78] sm:$0xff] %vm756, %v714
        %772 = vst [vmem:[%s228 + $0x80] sm:$0xff] %v715
        %773 = vst.msk [vmem:[%s228 + $0x88] sm:$0xff] %vm756, %v716
        %774 = vst [vmem:[%s228 + $0x90] sm:$0xff] %v717
        %775 = vst.msk [vmem:[%s228 + $0x98] sm:$0xff] %vm756, %v718
        %776 = vst [vmem:[%s228 + $0xa0] sm:$0xff] %v719
        %777 = vst.msk [vmem:[%s228 + $0xa8] sm:$0xff] %vm756, %v720
        %778 = vst [vmem:[%s228 + $0xb0] sm:$0xff] %v721
        %779 = vst.msk [vmem:[%s228 + $0xb8] sm:$0xff] %vm756, %v722
        %780 = vst [vmem:[%s228 + $0xc0] sm:$0xff] %v723
        %781 = vst.msk [vmem:[%s228 + $0xc8] sm:$0xff] %vm756, %v724
        %782 = vst [vmem:[%s228 + $0xd0] sm:$0xff] %v725
        %783 = vst.msk [vmem:[%s228 + $0xd8] sm:$0xff] %vm756, %v726
        %784 = vst [vmem:[%s228 + $0xe0] sm:$0xff] %v727
        %785 = vst.msk [vmem:[%s228 + $0xe8] sm:$0xff] %vm756, %v728
        %786 = vst [vmem:[%s228 + $0xf0] sm:$0xff] %v729
        %787 = vst.msk [vmem:[%s228 + $0xf8] sm:$0xff] %vm756, %v730
        %788 = vst [vmem:[%s228 + $0x100] sm:$0xff] %v731
        %789 = vst.msk [vmem:[%s228 + $0x108] sm:$0xff] %vm756, %v732
        %790 = vst [vmem:[%s228 + $0x110] sm:$0xff] %v733
        %791 = vst.msk [vmem:[%s228 + $0x118] sm:$0xff] %vm756, %v734
        %792 = vst [vmem:[%s228 + $0x120] sm:$0xff] %v735
        %793 = vst.msk [vmem:[%s228 + $0x128] sm:$0xff] %vm756, %v736
        %794 = vst [vmem:[%s228 + $0x130] sm:$0xff] %v737
        %795 = vst.msk [vmem:[%s228 + $0x138] sm:$0xff] %vm756, %v738
        %796 = vst [vmem:[%s228 + $0x140] sm:$0xff] %v739
        %797 = vst.msk [vmem:[%s228 + $0x148] sm:$0xff] %vm756, %v740
        %798 = vst [vmem:[%s228 + $0x150] sm:$0xff] %v741
        %799 = vst.msk [vmem:[%s228 + $0x158] sm:$0xff] %vm756, %v742
        %800 = vst [vmem:[%s228 + $0x160] sm:$0xff] %v743
        %801 = vst.msk [vmem:[%s228 + $0x168] sm:$0xff] %vm756, %v744
        %802 = vst [vmem:[%s228 + $0x170] sm:$0xff] %v745
        %803 = vst.msk [vmem:[%s228 + $0x178] sm:$0xff] %vm756, %v746
        %804 = vst [vmem:[%s228 + $0x180] sm:$0xff] %v747
        %805 = vst.msk [vmem:[%s228 + $0x188] sm:$0xff] %vm756, %v748
        %806 = vst [vmem:[%s228 + $0x190] sm:$0xff] %v749
        %807 = vst.msk [vmem:[%s228 + $0x198] sm:$0xff] %vm756, %v750
        %808 = vst [vmem:[%s228 + $0x1a0] sm:$0xff] %v751
        %809 = vst.msk [vmem:[%s228 + $0x1a8] sm:$0xff] %vm756, %v752
        %810 = vst [vmem:[%s228 + $0x1b0] sm:$0xff] %v753
        %811 = vst.msk [vmem:[%s228 + $0x1b8] sm:$0xff] %vm756, %v754
        %s812 = sand.u32 %s120, 1
        %s813 = scalar_lea.sflag [#allocation6], %s812
        %s814 = sand.u32 %s120, 1
        %s815 = smul.addr %s814, 448
        %s816 = scalar_lea.vmem [#allocation9], %s815
        // Predicated region
        $region41: #{tpu_custom_call.1} parent=31 // pred_check
          %p817 = pneg %p130
        $region42: #{tpu_custom_call.1} parent=31 // pred_check_branch
          %819 = sbr.rel (%p817) target = $region44
        $region43: #{tpu_custom_call.1} parent=31 // pred_region
          %s821 = ssub.s32 7168, 7168
          %822 = vsyncadd %s813, %s821
          %s823 = smul.addr %s33, 56
          %s824 = smul.addr %s32, 168
          %s825 = sadd.s32 %s823, %s824
          %s826 = smul.addr %s825, 128
          %s827 = scalar_lea.hbm %s4, %s826
          %s828 = sshll.u32 %s816, 4
          %s829 = int_to_ptr.vmem [resolvable:$true] %s828
          %834 = dma.vmem_to_hbm [thread:$0]  %s829, 7168, %s827, %s813, 256, 256, 16
        $region44: #{tpu_custom_call.1} parent=31 // pred_fallthru
          _
      $region32: #{tpu_custom_call.1} parent=5 // pred_fallthru
        _
      %p835 = scmp.le.s32.totalorder 2, %s23
      // Predicated region
      $region45: #{tpu_custom_call.1} parent=5 // pred_check
        %p836 = pneg %p835
      $region46: #{tpu_custom_call.1} parent=5 // pred_check_branch
        %838 = sbr.rel (%p836) target = $region48
      $region47: #{tpu_custom_call.1} parent=5 // pred_region
        %s839 = ssub.s32 %s23, 2
        // Predicated region
        $region49: #{tpu_custom_call.1} parent=47 // pred_check
          %p840 = pneg %p136
        $region50: #{tpu_custom_call.1} parent=47 // pred_check_branch
          %842 = sbr.rel (%p840) target = $region52
        $region51: #{tpu_custom_call.1} parent=47 // pred_region
          %s843 = sand.u32 %s121, 1
          %s844 = scalar_lea.sflag [#allocation6], %s843
          %s845 = sand.u32 %s121, 1
          %s846 = smul.addr %s845, 448
          %s847 = scalar_lea.vmem [#allocation9], %s846
          %848 = dma.done %s844, 7168
        $region52: #{tpu_custom_call.1} parent=47 // pred_fallthru
          _
      $region48: #{tpu_custom_call.1} parent=5 // pred_fallthru
        _
    $region6: #{tpu_custom_call.1} parent=1 // loop_footer
      %s27 = sadd.s32 1, %s23
    $region7: #{tpu_custom_call.1} parent=1 // loop_footer_branch
      %22 = sbr.rel target = $region3
    $region8: #{tpu_custom_call.1} parent=1 // loop_exit
      _
    %849 = vsyncpa [#allocation5], 1
    %s850 = scalar_lea.sflag [#allocation5], 1
    %851 = vsyncpa %s850, 1
    %852 = vsyncpa [#allocation8], 1
    %853 = vsyncpa [#allocation6], 1
    %s854 = scalar_lea.sflag [#allocation6], 1
    %855 = vsyncpa %s854, 1

</llo_original>
